<compile_context>
chip_gen: v5e
topology: v5e:2x2
jax: 0.10.0
libtpu: 0.0.40
codegen_flags: <defaults>
</compile_context>

<pallas_src>
import functools

import jax
import jax.numpy as jnp
from jax.experimental import pallas as pl
from jax.experimental.pallas import tpu as pltpu


# Explicit scoped-VMEM limit that is safe on every generation
# (v5e scoped default is only 16 MiB; v7x physical VMEM is 64 MiB).
_VMEM_LIMIT_BYTES = 32 * 1024 * 1024


def _tgcn_kernel(x_ref, adj_ref, w_ref, b_ref, o_ref, *, project_first):
    """One batch tile: y = ReLU(adj @ x @ W + b), stored lane-dense (TB, S*O)."""
    TB, S, F = x_ref.shape
    O = w_ref.shape[1]

    # Adjacency is streamed as bf16 (exact for 0/1 edge weights); compute f32.
    adj = adj_ref[...].astype(jnp.float32)
    x = x_ref[...]
    w = w_ref[...]

    if project_first:
        # O < F: project down first, then aggregate the narrower activations.
        xw = jnp.einsum("bsf,fo->bso", x, w, preferred_element_type=jnp.float32)
        h = jnp.einsum("bst,bto->bso", adj, xw,
                       preferred_element_type=jnp.float32)
    else:
        # F <= O: aggregate first (same op order as the PyTorch module).
        ax = jnp.einsum("bst,btf->bsf", adj, x,
                        preferred_element_type=jnp.float32)
        h = jnp.einsum("bsf,fo->bso", ax, w, preferred_element_type=jnp.float32)

    y = jnp.maximum(h + b_ref[...], 0.0)           # bias + ReLU on the VPU

    # Lane-dense store: trailing dim S*O instead of O avoids masked vst when
    # O < 128 and presents an unpadded output slab to the writeback DMA.
    # TODO(synk): if the real graph_builder always emits the banded temporal
    # chain, the aggregation einsum could be two pltpu.roll's + add (XLU path)
    # instead of per-sample MXU matmuls; kept generic for arbitrary graphs.
    o_ref[...] = y.reshape(TB, S * O)


def _choose_batch_tile(B, S, F, O, vmem_limit_bytes):
    """VMEM-budget-driven batch tile that divides B (no wrapper-side padding)."""
    # Double-buffered per-sample block bytes: adj bf16, x f32, out f32.
    per_sample = 2 * (2 * S * S + 4 * S * F + 4 * S * O)
    resident = 2 * 4 * (F * O + O)                       # weight + bias
    budget = int(vmem_limit_bytes * 0.6) - resident      # headroom for padding
    tb_vmem = max(1, budget // max(per_sample, 1))
    tb_pipe = max(1, B // 4)      # target >= 4 grid steps so DMA can pipeline
    tb = min(B, tb_vmem, tb_pipe)
    if tb >= B:
        return B                  # tiny batch: single grid step (overhead >> compute)
    # Output block is (TB, S*O): its second-to-last dim must be a multiple of
    # 8 (sublane) unless it spans the full batch.  Also require TB | B so the
    # wrapper never has to jnp.pad adj/x in HBM.
    tb = (tb // 8) * 8
    while tb >= 8 and B % tb != 0:
        tb -= 8
    return tb if tb >= 8 else B


def temporal_gcn_forward(x, adj, weight, bias):
    """x: (B,S,F) f32, adj: (B,S,S) 0/1 floats, weight: (O,F), bias: (O,)."""
    B, S, F = x.shape
    O = weight.shape[0]

    x = x.astype(jnp.float32)
    adj = adj.astype(jnp.bfloat16)             # 0/1 values -> exact in bf16
    weight_t = weight.astype(jnp.float32).T    # (F, O) for in-kernel x @ W
    bias2d = bias.astype(jnp.float32).reshape(1, O)

    project_first = O < F                      # min(F, O) picks the matmul order

    TB = _choose_batch_tile(B, S, F, O, _VMEM_LIMIT_BYTES)
    n_steps = B // TB

    flops = B * (2 * S * F * O + 2 * S * S * (O if project_first else F))
    bytes_accessed = (2 * B * S * S + 4 * B * S * F + 4 * B * S * O
                      + 4 * F * O + 4 * O)

    kernel = functools.partial(_tgcn_kernel, project_first=project_first)

    out_flat = pl.pallas_call(
        kernel,
        out_shape=jax.ShapeDtypeStruct((B, S * O), jnp.float32),
        grid_spec=pltpu.PrefetchScalarGridSpec(
            num_scalar_prefetch=0,
            grid=(n_steps,),
            in_specs=[
                pl.BlockSpec((TB, S, F), lambda b: (b, 0, 0)),   # x tile (f32)
                pl.BlockSpec((TB, S, S), lambda b: (b, 0, 0)),   # adj tile (bf16)
                pl.BlockSpec((F, O), lambda b: (0, 0)),          # resident weight
                pl.BlockSpec((1, O), lambda b: (0, 0)),          # resident bias
            ],
            out_specs=pl.BlockSpec((TB, S * O), lambda b: (b, 0)),
        ),
        compiler_params=pltpu.CompilerParams(
            dimension_semantics=("parallel",),   # batch axis shards across v7x TCs
            vmem_limit_bytes=_VMEM_LIMIT_BYTES),
        cost_estimate=pl.CostEstimate(
            flops=flops, transcendentals=0, bytes_accessed=bytes_accessed),
    )(x, adj, weight_t, bias2d)

    return out_flat.reshape(B, S, O)


def build_chain_adjacency(batch_size, seq_len, dtype=jnp.float32):
    """Deterministic stand-in for graph_builder.build_graph_for_batch:
    temporal chain graph (edges t<->t+1 for every sample), densified exactly
    like torch.sparse_coo_tensor(...).to_dense()."""
    # TODO(synk): the external graph_builder is a data dependency, not module math.
    idx = jnp.arange(seq_len)
    up = (idx[:, None] == idx[None, :] + 1).astype(dtype)     # edge t -> t-1
    down = (idx[:, None] + 1 == idx[None, :]).astype(dtype)   # edge t -> t+1
    adj = up + down                                           # (S, S), values 0/1
    return jnp.broadcast_to(adj, (batch_size, seq_len, seq_len))


def init_linear_params(key, input_dim, output_dim):
    """Deterministic nn.Linear-style init: U(-1/sqrt(in), 1/sqrt(in))."""
    kw, kb = jax.random.split(key)
    bound = 1.0 / (input_dim ** 0.5)
    weight = jax.random.uniform(kw, (output_dim, input_dim), jnp.float32,
                                minval=-bound, maxval=bound)
    bias = jax.random.uniform(kb, (output_dim,), jnp.float32,
                              minval=-bound, maxval=bound)
    return weight, bias


if __name__ == "__main__":
    key = jax.random.PRNGKey(0)
    k_x, k_p = jax.random.split(key)

    B, S, F, O = 2, 8, 32, 32          # batch, seq_len, n_features, output_dim

    x = jax.random.normal(k_x, (B, S, F), dtype=jnp.float32)
    adj = build_chain_adjacency(B, S)                       # (B, S, S) f32, 0/1
    weight, bias = init_linear_params(k_p, F, O)            # (O, F), (O,)

    out = temporal_gcn_forward(x, adj, weight, bias)
    out = jax.block_until_ready(out)

    # Pure-JAX reference, same op order as the PyTorch module.
    hp = jax.lax.Precision.HIGHEST
    ref = jnp.einsum("bst,btf->bsf", adj, x, precision=hp)
    ref = jnp.maximum(
        jnp.einsum("bsf,of->bso", ref, weight, precision=hp) + bias, 0.0)

    assert out.shape == (B, S, O)
    assert jnp.allclose(out, ref, atol=1e-4, rtol=1e-4), "mismatch vs reference"

    print("KERNEL_OK")
</pallas_src>

<mosaic_0001>
module attributes {stable_mosaic.version = 11 : i64} {
  func.func @_tgcn_kernel(%arg0: i32, %arg1: memref<2x8x32xf32, #tpu.memory_space<vmem>>, %arg2: memref<2x8x8xbf16, #tpu.memory_space<vmem>>, %arg3: memref<32x32xf32, #tpu.memory_space<vmem>>, %arg4: memref<1x32xf32, #tpu.memory_space<vmem>>, %arg5: memref<2x256xf32, #tpu.memory_space<vmem>>) attributes {dimension_semantics = [#tpu.dimension_semantics<parallel>], iteration_bounds = array<i64: 1>, scalar_prefetch = 0 : i64, scratch_operands = 0 : i64, tpu.core_type = #tpu.core_type<tc>, window_params = [{transform_indices = @transform_0, window_bounds = array<i64: 2, 8, 32>}, {transform_indices = @transform_1, window_bounds = array<i64: 2, 8, 8>}, {pipeline_mode = #tpu.pipeline_mode<synchronous>, transform_indices = @transform_2, window_bounds = array<i64: 32, 32>}, {pipeline_mode = #tpu.pipeline_mode<synchronous>, transform_indices = @transform_3, window_bounds = array<i64: 1, 32>}, {transform_indices = @transform_4, window_bounds = array<i64: 2, 256>}]} {
    %c0 = arith.constant 0 : index
    %c0_0 = arith.constant 0 : index
    %c0_1 = arith.constant 0 : index
    %0 = vector.load %arg2[%c0, %c0_0, %c0_1] : memref<2x8x8xbf16, #tpu.memory_space<vmem>>, vector<2x8x8xbf16>
    %1 = arith.extf %0 : vector<2x8x8xbf16> to vector<2x8x8xf32>
    %c0_2 = arith.constant 0 : index
    %c0_3 = arith.constant 0 : index
    %c0_4 = arith.constant 0 : index
    %2 = vector.load %arg1[%c0_2, %c0_3, %c0_4] : memref<2x8x32xf32, #tpu.memory_space<vmem>>, vector<2x8x32xf32>
    %c0_5 = arith.constant 0 : index
    %c0_6 = arith.constant 0 : index
    %3 = vector.load %arg3[%c0_5, %c0_6] : memref<32x32xf32, #tpu.memory_space<vmem>>, vector<32x32xf32>
    "tpu.trace_start"() <{level = 10 : i32, message = "bst,btf->bsf"}> : () -> ()
    %cst = arith.constant dense<0.000000e+00> : vector<2x8x32xf32>
    %4 = tpu.matmul %1, %2, %cst {dimension_numbers = #tpu.dot_dimension_numbers<[2], [1], [1], [2], [0, 0, 0, 1, 1, 2], [0], [0]>} : vector<2x8x8xf32>, vector<2x8x32xf32>, vector<2x8x32xf32> -> vector<2x8x32xf32>
    "tpu.trace_stop"() : () -> ()
    "tpu.trace_start"() <{level = 10 : i32, message = "bsf,fo->bso"}> : () -> ()
    %cst_7 = arith.constant dense<0.000000e+00> : vector<2x8x32xf32>
    %5 = tpu.matmul %4, %3, %cst_7 {dimension_numbers = #tpu.dot_dimension_numbers<[2], [0], [0, 1], [1], [0, 0, 0, 1, 1, 1], [], []>} : vector<2x8x32xf32>, vector<32x32xf32>, vector<2x8x32xf32> -> vector<2x8x32xf32>
    "tpu.trace_stop"() : () -> ()
    %c0_8 = arith.constant 0 : index
    %c0_9 = arith.constant 0 : index
    %6 = vector.load %arg4[%c0_8, %c0_9] : memref<1x32xf32, #tpu.memory_space<vmem>>, vector<1x32xf32>
    %7 = vector.shape_cast %6 : vector<1x32xf32> to vector<1x1x32xf32>
    %8 = vector.broadcast %7 : vector<1x1x32xf32> to vector<2x8x32xf32>
    %9 = arith.addf %5, %8 : vector<2x8x32xf32>
    %cst_10 = arith.constant 0.000000e+00 : f32
    %10 = vector.broadcast %cst_10 : f32 to vector<2x8x32xf32>
    %11 = arith.maximumf %9, %10 : vector<2x8x32xf32>
    %12 = vector.shape_cast %11 : vector<2x8x32xf32> to vector<2x256xf32>
    %c0_11 = arith.constant 0 : index
    %c0_12 = arith.constant 0 : index
    %13 = vector.load %arg5[%c0_11, %c0_12] : memref<2x256xf32, #tpu.memory_space<vmem>>, vector<2x256xf32>
    tpu.vector_store %arg5[%c0_11, %c0_12], %12 {strides = array<i32>} : memref<2x256xf32, #tpu.memory_space<vmem>>, vector<2x256xf32>,
    return
  }
  func.func @transform_0(%arg0: i32) -> (i32, i32, i32) {
    %c0_i32 = arith.constant 0 : i32
    %c0_i32_0 = arith.constant 0 : i32
    %c0_i32_1 = arith.constant 0 : i32
    return %arg0, %c0_i32, %c0_i32_0 : i32, i32, i32
  }
  func.func @transform_1(%arg0: i32) -> (i32, i32, i32) {
    %c0_i32 = arith.constant 0 : i32
    %c0_i32_0 = arith.constant 0 : i32
    %c0_i32_1 = arith.constant 0 : i32
    return %arg0, %c0_i32, %c0_i32_0 : i32, i32, i32
  }
  func.func @transform_2(%arg0: i32) -> (i32, i32) {
    %c0_i32 = arith.constant 0 : i32
    %c0_i32_0 = arith.constant 0 : i32
    %c0_i32_1 = arith.constant 0 : i32
    return %c0_i32, %c0_i32_0 : i32, i32
  }
  func.func @transform_3(%arg0: i32) -> (i32, i32) {
    %c0_i32 = arith.constant 0 : i32
    %c0_i32_0 = arith.constant 0 : i32
    %c0_i32_1 = arith.constant 0 : i32
    return %c0_i32, %c0_i32_0 : i32, i32
  }
  func.func @transform_4(%arg0: i32) -> (i32, i32) {
    %c0_i32 = arith.constant 0 : i32
    %c0_i32_0 = arith.constant 0 : i32
    return %arg0, %c0_i32 : i32, i32
  }
}

</mosaic_0001>

<llo_original>
// kernel: tpu_custom_call.1
$region0: #{tpu_custom_call.1}
  #allocation0 [shape = 'u32[]', space=smem, size = 0x4, offset = 0x4, fixed_abs, tag = 'smem constant byte address 0x4 - core index']
  #allocation1 [shape = 'u32[72,128]{1,0:T(1,128)}', space=vmem, size = 0x9000, scoped, tag = 'internal scratch']
  %s0 = inlined_call_operand.hbm [shape: f32[2,8,32], index: 0, kind: input, shape index: {}]
  %s1 = inlined_call_operand.hbm [shape: bf16[2,8,8], index: 1, kind: input, shape index: {}]
  %s2 = inlined_call_operand.hbm [shape: f32[32,32], index: 2, kind: input, shape index: {}]
  %s3 = inlined_call_operand.vmem [shape: f32[1,32], index: 3, kind: input, shape index: {}]
  %s4 = inlined_call_operand.hbm [shape: f32[2,256], index: 4, kind: output, shape index: {}]
  %s5 = sld [smem:[#allocation0]]
  $region38: #{tpu_custom_call.1} parent=0
    _
  %s7 = ssub.s32 1, %s5
  %s8 = scalar_select 0, %s7, %s5
  $region1: #{tpu_custom_call.1} parent=0
    #allocation2 [shape = 'u8[8192]{0}', space=vmem, size = 0x2000, scoped, tag = 'input window, operand 0, single buffered']
    #allocation3 [shape = 's32[1]{0}', space=sflag, size = 0x4, scoped, tag = 'scoped memory for tpu_custom_call.1']
    #allocation4 [shape = 's32[1]{0}', space=sflag, size = 0x4, scoped, tag = 'scoped memory for tpu_custom_call.1']
    #allocation5 [shape = 'u8[4096]{0}', space=vmem, size = 0x1000, scoped, tag = 'input window, operand 1, single buffered']
    #allocation6 [shape = 's32[1]{0}', space=sflag, size = 0x4, scoped, tag = 'scoped memory for tpu_custom_call.1']
    #allocation7 [shape = 'u8[16384]{0}', space=vmem, size = 0x4000, scoped, tag = 'input window, operand 2, single buffered']
    #allocation8 [shape = 'u8[2048]{0}', space=vmem, size = 0x800, scoped, tag = 'output window, operand 0, single buffered']
    %9 = vsyncpa [#allocation3], 0
    %10 = vsyncpa [#allocation6], 0
    %11 = vsyncpa [#allocation4], 0
    // Predicated region
    $region2: #{tpu_custom_call.1} parent=1 // pred_check
      _
    $region3: #{tpu_custom_call.1} parent=1 // pred_check_branch
      %13 = sbr.rel (0) target = $region5
    $region4: #{tpu_custom_call.1} parent=1 // pred_region
      %15 = vsyncadd [#allocation3], 0
      %s16 = sshll.u32 %s0, 4
      %s17 = int_to_ptr.hbm [resolvable:$true] %s16
      %s18 = sshll.u32 [#allocation2], 4
      %s19 = int_to_ptr.vmem [resolvable:$true] %s18
      %24 = dma.hbm_to_vmem [thread:$0]  %s17, 256, %s19, [#allocation3], 128, 128, 8
    $region5: #{tpu_custom_call.1} parent=1 // pred_fallthru
      _
    // Predicated region
    $region6: #{tpu_custom_call.1} parent=1 // pred_check
      _
    $region7: #{tpu_custom_call.1} parent=1 // pred_check_branch
      %26 = sbr.rel (0) target = $region9
    $region8: #{tpu_custom_call.1} parent=1 // pred_region
      %28 = vsyncadd [#allocation6], 0
      %s29 = sshll.u32 %s1, 4
      %s30 = int_to_ptr.hbm [resolvable:$true] %s29
      %s31 = sshll.u32 [#allocation5], 4
      %s32 = int_to_ptr.vmem [resolvable:$true] %s31
      %37 = dma.hbm_to_vmem [thread:$0]  %s30, 128, %s32, [#allocation6], 64, 64, 4
    $region9: #{tpu_custom_call.1} parent=1 // pred_fallthru
      _
    // Predicated region
    $region10: #{tpu_custom_call.1} parent=1 // pred_check
      _
    $region11: #{tpu_custom_call.1} parent=1 // pred_check_branch
      %39 = sbr.rel (0) target = $region13
    $region12: #{tpu_custom_call.1} parent=1 // pred_region
      %41 = vsyncadd [#allocation6], 0
      %s42 = sshll.u32 %s2, 4
      %s43 = int_to_ptr.hbm [resolvable:$true] %s42
      %s44 = sshll.u32 [#allocation7], 4
      %s45 = int_to_ptr.vmem [resolvable:$true] %s44
      %50 = dma.hbm_to_vmem [thread:$0]  %s43, 512, %s45, [#allocation6], 128, 128, 8
    $region13: #{tpu_custom_call.1} parent=1 // pred_fallthru
      _
    // Predicated region
    $region14: #{tpu_custom_call.1} parent=1 // pred_check
      _
    $region15: #{tpu_custom_call.1} parent=1 // pred_check_branch
      %52 = sbr.rel (0) target = $region17
    $region16: #{tpu_custom_call.1} parent=1 // pred_region
      _
    $region17: #{tpu_custom_call.1} parent=1 // pred_fallthru
      _
    // Predicated region
    $region18: #{tpu_custom_call.1} parent=1 // pred_check
      _
    $region19: #{tpu_custom_call.1} parent=1 // pred_check_branch
      %54 = sbr.rel (0) target = $region21
    $region20: #{tpu_custom_call.1} parent=1 // pred_region
      %56 = dma.done [#allocation3], 256
    $region21: #{tpu_custom_call.1} parent=1 // pred_fallthru
      _
    // Predicated region
    $region22: #{tpu_custom_call.1} parent=1 // pred_check
      _
    $region23: #{tpu_custom_call.1} parent=1 // pred_check_branch
      %58 = sbr.rel (0) target = $region25
    $region24: #{tpu_custom_call.1} parent=1 // pred_region
      %60 = dma.done [#allocation6], 128
    $region25: #{tpu_custom_call.1} parent=1 // pred_fallthru
      _
    // Predicated region
    $region26: #{tpu_custom_call.1} parent=1 // pred_check
      _
    $region27: #{tpu_custom_call.1} parent=1 // pred_check_branch
      %62 = sbr.rel (0) target = $region29
    $region28: #{tpu_custom_call.1} parent=1 // pred_region
      %64 = dma.done [#allocation6], 512
    $region29: #{tpu_custom_call.1} parent=1 // pred_fallthru
      _
    %v65 = vld [vmem:[#allocation5] sm:$0xf]
    %v66 = vld [vmem:[#allocation5 + $0x4] sm:$0xf]
    %v67 = vunpack.c.l.bf16 %v65
    %v68 = vunpack.c.l.bf16 %v66
    %v69 = vld [vmem:[#allocation2] sm:$0xff]
    %v70 = vld [vmem:[#allocation2 + $0x8] sm:$0xff]
    %v71 = vld [vmem:[#allocation7] sm:$0xff]
    %v72 = vld [vmem:[#allocation7 + $0x8] sm:$0xff]
    %v73 = vld [vmem:[#allocation7 + $0x10] sm:$0xff]
    %v74 = vld [vmem:[#allocation7 + $0x18] sm:$0xff]
    %vm75 = vcmask 64512
    %v77 = vsel %vm75, %v67, 0
    %79 = vmatpush.msra.mxu0 0.0
    %80 = vmatpush.msra.mxu0 0.0
    %81 = vmatpush.msra.mxu0 0.0
    %82 = vmatpush.msra.mxu0 0.0
    %83 = vmatpush.msra.mxu0 0.0
    %84 = vmatpush.msra.mxu0 0.0
    %85 = vmatpush.msra.mxu0 0.0
    %86 = vmatpush.msra.mxu0 0.0
    %87 = vmatpush.msra.mxu0 0.0
    %88 = vmatpush.msra.mxu0 0.0
    %89 = vmatpush.msra.mxu0 0.0
    %90 = vmatpush.msra.mxu0 0.0
    %91 = vmatpush.msra.mxu0 0.0
    %92 = vmatpush.msra.mxu0 0.0
    %93 = vmatpush.msra.mxu0 0.0
    %94 = vmatpush.msra.mxu0 %v69
    %95 = vmatmul.f32.gmra.mxu0 %v77
    %v96 = vpop.f32.mrf.mxu0
    %v97 = vadd.f32 0.0, %v96
    %98 = vdwg.mxu0
    %v100 = vsel %vm75, %v68, 0
    %102 = vmatpush.msra.mxu0 0.0
    %103 = vmatpush.msra.mxu0 0.0
    %104 = vmatpush.msra.mxu0 0.0
    %105 = vmatpush.msra.mxu0 0.0
    %106 = vmatpush.msra.mxu0 0.0
    %107 = vmatpush.msra.mxu0 0.0
    %108 = vmatpush.msra.mxu0 0.0
    %109 = vmatpush.msra.mxu0 0.0
    %110 = vmatpush.msra.mxu0 0.0
    %111 = vmatpush.msra.mxu0 0.0
    %112 = vmatpush.msra.mxu0 0.0
    %113 = vmatpush.msra.mxu0 0.0
    %114 = vmatpush.msra.mxu0 0.0
    %115 = vmatpush.msra.mxu0 0.0
    %116 = vmatpush.msra.mxu0 0.0
    %117 = vmatpush.msra.mxu0 %v70
    %118 = vmatmul.f32.gmra.mxu0 %v100
    %v119 = vpop.f32.mrf.mxu0
    %v120 = vadd.f32 0.0, %v119
    %121 = vdwg.mxu0
    %v122 = vld [vmem:[%s3] sm:$0x1]
    %v124 = vperm.slane %v122, 0
    %vm126 = vcmask 261120
    %v128 = vsel %vm126, %v97, 0
    %v131 = vsel %vm126, %v120, 0
    %133 = vmatpush.msra.mxu0 0.0
    %134 = vmatpush.msra.mxu0 0.0
    %135 = vmatpush.msra.mxu0 0.0
    %136 = vmatpush.msra.mxu0 0.0
    %137 = vmatpush.msra.mxu0 0.0
    %138 = vmatpush.msra.mxu0 0.0
    %139 = vmatpush.msra.mxu0 0.0
    %140 = vmatpush.msra.mxu0 0.0
    %141 = vmatpush.msra.mxu0 0.0
    %142 = vmatpush.msra.mxu0 0.0
    %143 = vmatpush.msra.mxu0 0.0
    %144 = vmatpush.msra.mxu0 0.0
    %145 = vmatpush.msra.mxu0 %v74
    %146 = vmatpush.msra.mxu0 %v73
    %147 = vmatpush.msra.mxu0 %v72
    %148 = vmatpush.msra.mxu0 %v71
    %149 = vmatmul.f32.gmra.mxu0 %v128
    %v150 = vpop.f32.mrf.mxu0
    %v151 = vadd.f32 %v124, %v150
    %152 = vmatmul.f32.gmra.mxu0 %v131
    %v153 = vpop.f32.mrf.mxu0
    %v154 = vadd.f32 %v124, %v153
    %155 = vdwg.mxu0
    %v156 = vmax.f32 %v151, 0.0
    %v157 = vmax.f32 %v154, 0.0
    %v158 = vrot.slane %v156, 4
    %vm159 = vcmask 1047556
    %v160 = vsel %vm159, 0.0, %v158
    %v162 = vunpack.c.l.s4 1983009808
    %v163 = vunpack.c.0.s8 %v162
    %v164 = vperm.slane %v156, %v163
    %v166 = vunpack.c.l.s4 1983009808
    %v167 = vunpack.c.0.s8 %v166
    %v168 = vperm.slane %v160, %v167
    %v169 = vrot.slane %v157, 4
    %v170 = vsel %vm159, 0.0, %v169
    %v172 = vunpack.c.l.s4 1983009808
    %v173 = vunpack.c.0.s8 %v172
    %v174 = vperm.slane %v157, %v173
    %v176 = vunpack.c.l.s4 1983009808
    %v177 = vunpack.c.0.s8 %v176
    %v178 = vperm.slane %v170, %v177
    %v179 = vrot.slane %v174, 4
    %v180 = vsel %vm159, %v179, %v164
    %v181 = vrot.slane %v164, 4
    %v182 = vsel %vm159, %v174, %v181
    %v184 = vunpack.c.l.s4 1934713408
    %v185 = vunpack.c.0.s8 %v184
    %v186 = vperm.slane %v180, %v185
    %v188 = vunpack.c.l.s4 1934713408
    %v189 = vunpack.c.0.s8 %v188
    %v190 = vperm.slane %v182, %v189
    %v191 = vrot.slane %v178, 4
    %v192 = vsel %vm159, %v191, %v168
    %v193 = vrot.slane %v168, 4
    %v194 = vsel %vm159, %v178, %v193
    %v196 = vunpack.c.l.s4 1934713408
    %v197 = vunpack.c.0.s8 %v196
    %v198 = vperm.slane %v192, %v197
    %v200 = vunpack.c.l.s4 1934713408
    %v201 = vunpack.c.0.s8 %v200
    %v202 = vperm.slane %v194, %v201
    %v203 = vrot.slane %v186, 4
    %v204 = vsel %vm159, 0.0, %v203
    %v205 = vrot.slane %v190, 4
    %v206 = vsel %vm159, 0.0, %v205
    %v207 = vrot.slane %v198, 4
    %v208 = vsel %vm159, 0.0, %v207
    %v209 = vrot.slane %v202, 4
    %v210 = vsel %vm159, 0.0, %v209
    %212 = vrot.lane.b32.xlu0 %v204, 32
    %v213 = vpop.permute.xlu0 %212
    %216 = vrot.lane.b32.xlu0 %v190, 64
    %v217 = vpop.permute.xlu0 %216
    %220 = vrot.lane.b32.xlu0 %v206, 96
    %v221 = vpop.permute.xlu0 %220
    %224 = vrot.lane.b32.xlu0 %v208, 32
    %v225 = vpop.permute.xlu0 %224
    %228 = vrot.lane.b32.xlu0 %v202, 64
    %v229 = vpop.permute.xlu0 %228
    %232 = vrot.lane.b32.xlu0 %v210, 96
    %v233 = vpop.permute.xlu0 %232
    %v235 = vsel %vm126, %v186, %v213
    %vm236 = vcmask 523264
    %v237 = vsel %vm236, %v235, %v217
    %vm238 = vcmask 785408
    %v239 = vsel %vm238, %v237, %v221
    %v240 = vsel %vm126, %v198, %v225
    %v241 = vsel %vm236, %v240, %v229
    %v242 = vsel %vm238, %v241, %v233
    %v245 = vrot.slane %v242, 6
    %vm246 = vcmask 1041408
    %v247 = vsel %vm246, %v239, %v245
    %249 = vst [vmem:[#allocation8] sm:$0xf] %v247
    // Predicated region
    $region30: #{tpu_custom_call.1} parent=1 // pred_check
      _
    $region31: #{tpu_custom_call.1} parent=1 // pred_check_branch
      %251 = sbr.rel (0) target = $region33
    $region32: #{tpu_custom_call.1} parent=1 // pred_region
      %253 = vsyncadd [#allocation4], 0
      %s255 = sshll.u32 [#allocation8], 4
      %s256 = int_to_ptr.vmem [resolvable:$true] %s255
      %s257 = sshll.u32 %s4, 4
      %s258 = int_to_ptr.hbm [resolvable:$true] %s257
      %260 = dma.vmem_to_hbm [thread:$0]  %s256, 64, %s258, [#allocation4]
    $region33: #{tpu_custom_call.1} parent=1 // pred_fallthru
      _
    // Predicated region
    $region34: #{tpu_custom_call.1} parent=1 // pred_check
      _
    $region35: #{tpu_custom_call.1} parent=1 // pred_check_branch
      %262 = sbr.rel (0) target = $region37
    $region36: #{tpu_custom_call.1} parent=1 // pred_region
      %264 = dma.done [#allocation4], 64
    $region37: #{tpu_custom_call.1} parent=1 // pred_fallthru
      _
    %265 = vsyncpa [#allocation3], 1
    %266 = vsyncpa [#allocation6], 1
    %267 = vsyncpa [#allocation4], 1

</llo_original>
